<compile_context>
chip_gen: v6e
topology: v6e:2x2x1
jax: 0.10.0
libtpu: 0.0.40
codegen_flags: <defaults>
</compile_context>

<pallas_src>
import functools

import jax
import jax.numpy as jnp
from jax.experimental import pallas as pl
from jax.experimental.pallas import tpu as pltpu

_LANE = 128
_VMEM_LIMIT_BYTES = 40 * 1024 * 1024  # explicit: > v5e 16 MiB scoped default, < v7x 64 MiB phys

# Hable curve constants.
_A, _B, _C, _D, _E, _F = 0.15, 0.5, 0.1, 0.2, 0.02, 0.3


def _hable_partial(x, recip=None):
    num = x * (_A * x + _C * _B) + _D * _E
    den = x * (_A * x + _B) + _D * _F
    if recip is None:
        return num / den - _E / _F
    return num * recip(den) - _E / _F


# Constant-folded on the host, identical on every tile (no per-tile divide).
_HABLE_WHITE_SCALE = float(1.0 / _hable_partial(11.2))


def _tonemap_math(x, name, gain, *, fast_math=False):
    """Elementwise tonemap math, mirrors the PyTorch forward passes exactly.

    fast_math=True replaces f32 divides with pl.reciprocal(approx=True) and is
    only valid *inside* a Pallas kernel (gated behind a flag because it differs
    from torch by ~1e-3 relative).
    """
    recip = (lambda d: pl.reciprocal(d, approx=True)) if fast_math else None

    if name == "Default":
        return jnp.clip(x * gain, 0.0, 1.0)
    elif name == "Exp":
        return jnp.clip(1.0 - jnp.exp(-(x * gain)), 0.0, 1.0)
    elif name == "Hable":
        return jnp.clip(_hable_partial(x * gain, recip) * _HABLE_WHITE_SCALE, 0.0, 1.0)
    elif name == "Log":
        return jnp.clip(jnp.log(1.0 + x * gain), 0.0, 1.0)
    elif name == "Reinhard":
        xg = x * gain
        den = 1.0 + xg
        res = xg * recip(den) if recip is not None else xg / den
        return jnp.clip(res, 0.0, 1.0)
    elif name == "SRGBHable":
        # x.pow(1/2.2) then Hable(gain) then clamp.  Negative HDR inputs
        # produce NaN here, matching torch.pow semantics.
        xp = jnp.power(x, 1.0 / 2.2)
        return jnp.clip(_hable_partial(xp * gain, recip) * _HABLE_WHITE_SCALE, 0.0, 1.0)
    elif name == "SRGB":
        xg = jnp.clip(x * gain, 0.0, 1.0)
        # pow of a [0,1] value is already in [0,1]; second clip dropped.
        return jnp.power(xg, 1.0 / 2.2)
    else:
        raise ValueError(f"Tonemapper {name} not supported.")


def _tonemap_kernel(gain_ref, x_ref, o_ref, *, name, fast_math):
    gain = gain_ref[0]                                  # SMEM scalar (runtime)
    x = x_ref[...].astype(jnp.float32)                  # upcast in-kernel
    o_ref[...] = _tonemap_math(x, name, gain, fast_math=fast_math).astype(o_ref.dtype)


def _round_up(v, m):
    return ((v + m - 1) // m) * m


def _pick_block_rows(rows, min_rows, block_rows):
    """Pick a tile row count: large for bandwidth, >=2 grid steps for v7x."""
    if rows <= 2 * min_rows:
        return rows                                     # single full-array block (always legal)
    target = _round_up(block_rows, min_rows)
    half = _round_up(pl.cdiv(rows, 2), min_rows)        # guarantee >=2 grid steps (both v7x TCs)
    return max(min(target, half), min_rows)


def _tonemap_rows(x2d, gain_arr, *, name, block_rows, fast_math, donate):
    """Run the tonemap kernel over a lane-dense (rows, 128) slab."""
    rows, lanes = x2d.shape
    min_rows = 8 if x2d.dtype.itemsize >= 4 else 16
    br = _pick_block_rows(rows, min_rows, block_rows)
    grid = (pl.cdiv(rows, br),)                         # ragged last block is masked by Pallas

    extra = {}
    if donate:
        # Output buffer aliases the x2d operand (operand 0 is the SMEM gain).
        extra["input_output_aliases"] = {1: 0}

    # TODO(synk): if a v7x profile shows exposed DMA at ~1us steps, sweep
    # pipeline_mode=pl.Buffered(3) on the x input BlockSpec.
    return pl.pallas_call(
        functools.partial(_tonemap_kernel, name=name, fast_math=fast_math),
        out_shape=jax.ShapeDtypeStruct((rows, lanes), x2d.dtype),
        grid=grid,
        in_specs=[
            pl.BlockSpec(memory_space=pltpu.MemorySpace.SMEM),   # gain scalar
            pl.BlockSpec((br, lanes), lambda i: (i, 0)),
        ],
        out_specs=pl.BlockSpec((br, lanes), lambda i: (i, 0)),
        compiler_params=pltpu.CompilerParams(
            dimension_semantics=("parallel",),
            vmem_limit_bytes=_VMEM_LIMIT_BYTES,
        ),
        **extra,
    )(gain_arr, x2d)


@functools.partial(jax.jit,
                   static_argnames=("name", "block_rows", "fast_math", "donate_input"))
def tonemap(x, name: str = "Reinhard", gain=1.0, block_rows=None,
            fast_math: bool = False, donate_input: bool = False):
    """Apply a tonemapping curve to an arbitrary-shaped tensor via Pallas."""
    orig_shape = x.shape
    out_dtype = x.dtype if jnp.issubdtype(x.dtype, jnp.floating) else jnp.float32
    x = x.astype(out_dtype)                             # no-op for float inputs

    itemsize = jnp.dtype(out_dtype).itemsize
    min_rows = 8 if itemsize >= 4 else 16
    if block_rows is None:
        # 4 MiB tiles either way; 2x double-buffered in+out = 16 MiB VMEM.
        block_rows = 8192 if itemsize >= 4 else 16384

    flat = x.reshape(-1)                                # free for contiguous arrays
    n = flat.shape[0]
    gain_arr = jnp.full((1,), gain, dtype=jnp.float32)

    main_n = (n // _LANE) * _LANE
    if main_n < min_rows * _LANE:
        # Tiny tensor: kernel launch / stitching not worth it — plain jnp.
        out = _tonemap_math(flat.astype(jnp.float32), name, gain_arr[0]).astype(out_dtype)
        return out.reshape(orig_shape)

    if main_n == n:
        # Copy-free path: numel is a multiple of 128.
        rows = n // _LANE
        x2d = flat.reshape(rows, _LANE)
        out2d = _tonemap_rows(x2d, gain_arr, name=name, block_rows=block_rows,
                              fast_math=fast_math, donate=donate_input)
        return out2d.reshape(orig_shape)

    # Ragged numel: kernel on the 128-aligned prefix, plain jnp on the <128
    # element tail (no full-array pad + slice round trips).
    rows = main_n // _LANE
    x2d = flat[:main_n].reshape(rows, _LANE)
    main_out = _tonemap_rows(x2d, gain_arr, name=name, block_rows=block_rows,
                             fast_math=fast_math, donate=False).reshape(-1)
    tail_out = _tonemap_math(flat[main_n:].astype(jnp.float32), name,
                             gain_arr[0]).astype(out_dtype)
    return jnp.concatenate([main_out, tail_out]).reshape(orig_shape)


class BaseTonemapper:
    """JAX/Pallas mirror of the PyTorch BaseTonemapper factory."""

    _SUPPORTED = ("Reinhard", "Hable", "SRGBHable", "SRGB", "Exp", "Log", "Default")

    def __init__(self, name: str, gain: float = 1.0):
        self.name = name
        self.gain = gain

    def __call__(self, x):
        return tonemap(x, name=self.name, gain=self.gain)

    @staticmethod
    def from_name(name: str = "Reinhard") -> "BaseTonemapper":
        try:
            name, gain = name.split("-")
            gain = float(gain)
        except Exception:
            gain = None
        if name not in BaseTonemapper._SUPPORTED:
            raise ValueError(f"Tonemapper {name} not supported.")
        return BaseTonemapper(name, 1.0 if gain is None else gain)


if __name__ == "__main__":
    key = jax.random.PRNGKey(0)
    ok = True

    # NCHW image, like the PyTorch module expects; HDR-ish positive values.
    x = jax.random.uniform(key, (2, 4, 16, 16), dtype=jnp.float32) * 4.0
    for spec in ["Default", "Exp", "Hable", "Log", "Reinhard",
                 "SRGBHable", "SRGB", "Reinhard-2.0"]:
        tm = BaseTonemapper.from_name(spec)
        out = jax.block_until_ready(tm(x))
        ref = _tonemap_math(x.astype(jnp.float32), tm.name, tm.gain)
        if not jnp.allclose(out, ref, atol=1e-5, rtol=1e-5):
            ok = False
            print(f"MISMATCH for {spec}")

    # Ragged grid (rows not a multiple of block_rows) exercising block masking
    # and the >=2-grid-step split.
    xr = jax.random.uniform(jax.random.PRNGKey(1), (2, 4, 30, 16),
                            dtype=jnp.float32) * 4.0
    outr = jax.block_until_ready(tonemap(xr, name="Hable", gain=1.5, block_rows=16))
    refr = _tonemap_math(xr, "Hable", 1.5)
    if not jnp.allclose(outr, refr, atol=1e-5, rtol=1e-5):
        ok = False
        print("MISMATCH for ragged Hable")

    # Non-multiple-of-128 numel, big enough to take the kernel-prefix + jnp-tail
    # split path (no full-array pad/slice).
    xs = jax.random.uniform(jax.random.PRNGKey(4), (5, 13, 40),
                            dtype=jnp.float32) * 4.0
    outs = jax.block_until_ready(tonemap(xs, name="Reinhard", gain=1.0))
    refs = _tonemap_math(xs, "Reinhard", 1.0)
    if not jnp.allclose(outs, refs, atol=1e-5, rtol=1e-5):
        ok = False
        print("MISMATCH for split-path Reinhard")

    # Tiny odd-size tensor: pure-jnp fallback path.
    xo = jax.random.uniform(jax.random.PRNGKey(2), (3, 5, 7),
                            dtype=jnp.float32) * 4.0
    outo = jax.block_until_ready(tonemap(xo, name="Log", gain=1.0))
    refo = _tonemap_math(xo, "Log", 1.0)
    if not jnp.allclose(outo, refo, atol=1e-5, rtol=1e-5):
        ok = False
        print("MISMATCH for odd-size Log")

    # bf16 input: native-dtype I/O, f32 math inside the kernel.
    xb = (jax.random.uniform(jax.random.PRNGKey(3), (2, 4, 16, 16),
                             dtype=jnp.float32) * 4.0).astype(jnp.bfloat16)
    outb = jax.block_until_ready(tonemap(xb, name="Reinhard", gain=1.0))
    refb = _tonemap_math(xb.astype(jnp.float32), "Reinhard", 1.0).astype(jnp.bfloat16)
    if outb.dtype != jnp.bfloat16 or not jnp.allclose(
            outb.astype(jnp.float32), refb.astype(jnp.float32), atol=1e-2):
        ok = False
        print("MISMATCH for bf16 Reinhard")

    # fast_math (approx reciprocal) and donated-input paths compile & run;
    # fast_math is only ~1e-3-accurate vs the exact divide, so loose tolerance.
    outf = jax.block_until_ready(tonemap(x, name="Hable", gain=1.0,
                                         fast_math=True, donate_input=True))
    reff = _tonemap_math(x, "Hable", 1.0)
    if not jnp.allclose(outf, reff, atol=5e-3, rtol=5e-3):
        ok = False
        print("MISMATCH for fast_math Hable")

    if ok:
        print("KERNEL_OK")
</pallas_src>

<mosaic_0001>
module attributes {stable_mosaic.version = 11 : i64} {
  func.func @_tonemap_kernel(%arg0: i32, %arg1: memref<1xf32, #tpu.memory_space<smem>>, %arg2: memref<16x128xf32, #tpu.memory_space<vmem>>, %arg3: memref<16x128xf32, #tpu.memory_space<vmem>>) attributes {dimension_semantics = [#tpu.dimension_semantics<parallel>], iteration_bounds = array<i64: 1>, scalar_prefetch = 0 : i64, scratch_operands = 0 : i64, tpu.core_type = #tpu.core_type<tc>, window_params = [{transform_indices = @transform_0, window_bounds = array<i64: 1>}, {transform_indices = @transform_1, window_bounds = array<i64: 16, 128>}, {transform_indices = @transform_2, window_bounds = array<i64: 16, 128>}]} {
    %c0 = arith.constant 0 : index
    %0 = memref.load %arg1[%c0] : memref<1xf32, #tpu.memory_space<smem>>
    %c0_0 = arith.constant 0 : index
    %c0_1 = arith.constant 0 : index
    %1 = vector.load %arg2[%c0_0, %c0_1] : memref<16x128xf32, #tpu.memory_space<vmem>>, vector<16x128xf32>
    %2 = vector.broadcast %0 : f32 to vector<16x128xf32>
    %3 = arith.mulf %1, %2 : vector<16x128xf32>
    %cst = arith.constant 0.000000e+00 : f32
    %cst_2 = arith.constant 1.000000e+00 : f32
    %4 = vector.broadcast %cst : f32 to vector<16x128xf32>
    %5 = arith.maximumf %4, %3 : vector<16x128xf32>
    %6 = vector.broadcast %cst_2 : f32 to vector<16x128xf32>
    %7 = arith.minimumf %6, %5 : vector<16x128xf32>
    %c0_3 = arith.constant 0 : index
    %c0_4 = arith.constant 0 : index
    %8 = vector.load %arg3[%c0_3, %c0_4] : memref<16x128xf32, #tpu.memory_space<vmem>>, vector<16x128xf32>
    tpu.vector_store %arg3[%c0_3, %c0_4], %7 {strides = array<i32>} : memref<16x128xf32, #tpu.memory_space<vmem>>, vector<16x128xf32>,
    return
  }
  func.func @transform_0(%arg0: i32) -> i32 {
    %c0_i32 = arith.constant 0 : i32
    %c0_i32_0 = arith.constant 0 : i32
    return %c0_i32 : i32
  }
  func.func @transform_1(%arg0: i32) -> (i32, i32) {
    %c0_i32 = arith.constant 0 : i32
    %c0_i32_0 = arith.constant 0 : i32
    return %arg0, %c0_i32 : i32, i32
  }
  func.func @transform_2(%arg0: i32) -> (i32, i32) {
    %c0_i32 = arith.constant 0 : i32
    %c0_i32_0 = arith.constant 0 : i32
    return %arg0, %c0_i32 : i32, i32
  }
}

</mosaic_0001>

<llo_original>
// kernel: tonemap.1
$region0: #{tonemap.1}
  #allocation0 [shape = 'u32[]', space=smem, size = 0x4, offset = 0x4, fixed_abs, tag = 'smem constant byte address 0x4 - core index']
  #allocation1 [shape = 'u32[144,128]{1,0:T(1,128)}', space=vmem, size = 0x12000, scoped, tag = 'internal scratch']
  #allocation2 [shape = 'f32[1]{0:T(128)S(6)}', space=smem, size = 0x200, scoped, tag = 'scoped memory for tonemap.1']
  %s0 = inlined_call_operand.<no memory space> [shape: f32[1], index: 0, kind: input, shape index: {}]
  %s1 = inlined_call_operand.vmem [shape: f32[16,128], index: 1, kind: input, shape index: {}]
  %s2 = inlined_call_operand.vmem [shape: f32[16,128], index: 2, kind: output, shape index: {}]
  %s3 = sld [smem:[#allocation0]]
  $region18: #{tonemap.1} parent=0
    _
  %s5 = ssub.s32 1, %s3
  %s6 = scalar_select 0, %s5, %s3
  %7 = sst [smem:[#allocation2]] %s0
  // Predicated region
  $region2: #{tonemap.1} parent=0 // pred_check
    _
  $region3: #{tonemap.1} parent=0 // pred_check_branch
    %9 = sbr.rel (0) target = $region5
  $region4: #{tonemap.1} parent=0 // pred_region
    _
  $region5: #{tonemap.1} parent=0 // pred_fallthru
    _
  // Predicated region
  $region6: #{tonemap.1} parent=0 // pred_check
    _
  $region7: #{tonemap.1} parent=0 // pred_check_branch
    %11 = sbr.rel (0) target = $region9
  $region8: #{tonemap.1} parent=0 // pred_region
    _
  $region9: #{tonemap.1} parent=0 // pred_fallthru
    _
  %s12 = sld [smem:[#allocation2]]
  %v13 = vld [vmem:[%s1] sm:$0xff]
  %v14 = vld [vmem:[%s1 + $0x8] sm:$0xff]
  %v15 = vstv %s12
  %v16 = vmul.f32 %v13, %v15
  %v17 = vmul.f32 %v14, %v15
  %v18 = vmax.f32 %v16, 0.0
  %v19 = vmax.f32 %v17, 0.0
  %v20 = vmin.f32 %v18, 1.0
  %v21 = vmin.f32 %v19, 1.0
  %22 = vst [vmem:[%s2] sm:$0xff] %v20
  %23 = vst [vmem:[%s2 + $0x8] sm:$0xff] %v21
  // Predicated region
  $region10: #{tonemap.1} parent=0 // pred_check
    _
  $region11: #{tonemap.1} parent=0 // pred_check_branch
    %25 = sbr.rel (0) target = $region13
  $region12: #{tonemap.1} parent=0 // pred_region
    _
  $region13: #{tonemap.1} parent=0 // pred_fallthru
    _
  // Predicated region
  $region14: #{tonemap.1} parent=0 // pred_check
    _
  $region15: #{tonemap.1} parent=0 // pred_check_branch
    %27 = sbr.rel (0) target = $region17
  $region16: #{tonemap.1} parent=0 // pred_region
    _
  $region17: #{tonemap.1} parent=0 // pred_fallthru
    _

</llo_original>
